<compile_context>
chip_gen: v7x
topology: tpu7x:2x2x1
jax: 0.10.0
libtpu: 0.0.40
codegen_flags: <defaults>
</compile_context>

<pallas_src>
import functools

import jax
import jax.numpy as jnp
from jax import lax
from jax.experimental import pallas as pl
from jax.experimental.pallas import tpu as pltpu

_MXU_DTYPE = jnp.bfloat16  # MXU-native operand dtype; accumulation stays f32.


# ----------------------------------------------------------------------------
# Kernel
# ----------------------------------------------------------------------------
def _decoder_bilstm_kernel(feat_ref, wimg_ref, bimg_ref, whh_ref, bias_ref,
                           out_ref, *, hidden, seq_len):
    """Fused bidirectional zero-input LSTM. Everything resident in VMEM."""
    H, T = hidden, seq_len

    # --- initial hidden state for BOTH directions in one MXU pass:
    #     (B, C) @ (C, 2H)  ->  [h0 | h0]   (PyTorch h0.repeat(2,1,1))
    h = jnp.dot(feat_ref[...], wimg_ref[...],
                preferred_element_type=jnp.float32) + bimg_ref[...]
    c = jnp.zeros_like(h)                      # (B, 2H), fwd lanes | bwd lanes

    whh = whh_ref[...]                         # (2H, 8H) bf16 block-diagonal
    bias = bias_ref[...]                       # (1, 8H)  f32 (b_ih + b_hh)

    # --- fused recurrence, statically unrolled (T is a small compile-time const)
    hs = []
    for _ in range(T):
        # x_t == 0  =>  gates = h_{t-1} @ W_hh^T + (b_ih + b_hh), both dirs at once
        gates = jnp.dot(h.astype(whh.dtype), whh,
                        preferred_element_type=jnp.float32) + bias   # (B, 8H)
        i = jax.nn.sigmoid(gates[:, 0 * 2 * H:1 * 2 * H])   # [i_f | i_b]
        f = jax.nn.sigmoid(gates[:, 1 * 2 * H:2 * 2 * H])   # [f_f | f_b]
        g = jnp.tanh(gates[:, 2 * 2 * H:3 * 2 * H])         # [g_f | g_b]
        o = jax.nn.sigmoid(gates[:, 3 * 2 * H:4 * 2 * H])   # [o_f | o_b]
        c = f * c + i * g
        h = o * jnp.tanh(c)
        hs.append(h)   # lanes [0:H] = fwd h(step t); lanes [H:2H] = bwd h(step t)

    # --- assemble the final layout in-kernel and do ONE lane-dense store.
    # Output time t needs [fwd h at step t | bwd h at step T-1-t] (PyTorch
    # re-aligns the reversed direction to the input time index).
    lane = lax.broadcasted_iota(jnp.int32, h.shape, 1)       # (B, 2H)
    is_fwd_lane = lane < H
    rows = [jnp.where(is_fwd_lane, hs[t], hs[T - 1 - t]) for t in range(T)]
    out_ref[...] = jnp.concatenate(rows, axis=1).astype(out_ref.dtype)  # (B, T*2H)


# ----------------------------------------------------------------------------
# One-time parameter preparation (hoisted out of the per-call path)
# ----------------------------------------------------------------------------
def prepare_decoder_params(params):
    """Pack PyTorch-layout LSTM params into the fused kernel layout (call once)."""
    H = params["b_img"].shape[0]

    # Image -> h0 linear, duplicated for the two directions: (C, 2H).
    wimg_cat = jnp.concatenate([params["W_img"].T, params["W_img"].T], axis=1)
    bimg_cat = jnp.concatenate([params["b_img"], params["b_img"]])[None, :]

    # Block-diagonal recurrent weights, gate layout [i_f i_b | f_f f_b | ...]:
    #   rows [0:H]   (fwd h lanes) feed the *_f columns,
    #   rows [H:2H]  (bwd h lanes) feed the *_b columns.
    wf = params["W_hh_f"].reshape(4, H, H)     # PyTorch row blocks: i, f, g, o
    wb = params["W_hh_b"].reshape(4, H, H)
    z = jnp.zeros((H, H), params["W_hh_f"].dtype)
    blocks = []
    for g in range(4):
        top = jnp.concatenate([wf[g].T, z], axis=1)          # (H, 2H)
        bot = jnp.concatenate([z, wb[g].T], axis=1)          # (H, 2H)
        blocks.append(jnp.concatenate([top, bot], axis=0))   # (2H, 2H)
    whh_bd = jnp.concatenate(blocks, axis=1)                 # (2H, 8H)

    bf = (params["b_ih_f"] + params["b_hh_f"]).reshape(4, H)
    bb = (params["b_ih_b"] + params["b_hh_b"]).reshape(4, H)
    bias_cat = jnp.concatenate([bf, bb], axis=1).reshape(1, 8 * H)

    # NOTE: weight_ih_l0 / weight_ih_l0_reverse multiply the all-zero LSTM
    # input, so they contribute nothing and are not packed.
    return {
        "wimg_cat": wimg_cat.astype(_MXU_DTYPE),
        "bimg_cat": bimg_cat.astype(jnp.float32),
        "whh_bd": whh_bd.astype(_MXU_DTYPE),
        "bias_cat": bias_cat.astype(jnp.float32),
    }


# ----------------------------------------------------------------------------
# Forward wrapper
# ----------------------------------------------------------------------------
@functools.partial(jax.jit, static_argnames=("num_labels",))
def decoder_binary_rnn_forward(cnn_features, prepped, num_labels):
    B = cnn_features.shape[0]
    H = prepped["bimg_cat"].shape[1] // 2
    T = num_labels

    vmem = pl.BlockSpec(memory_space=pltpu.MemorySpace.VMEM)
    out_flat = pl.pallas_call(
        functools.partial(_decoder_bilstm_kernel, hidden=H, seq_len=T),
        out_shape=jax.ShapeDtypeStruct((B, T * 2 * H), jnp.float32),
        in_specs=[vmem] * 5,
        out_specs=vmem,
    )(cnn_features.astype(_MXU_DTYPE),
      prepped["wimg_cat"], prepped["bimg_cat"],
      prepped["whh_bd"], prepped["bias_cat"])

    # Contiguous metadata-only reshape (no transpose / concat pass).
    return out_flat.reshape(B, T, 2 * H)


# ----------------------------------------------------------------------------
# Pure-JAX reference (mirrors torch.nn.LSTM bidirectional semantics)
# ----------------------------------------------------------------------------
def _reference_forward(cnn_features, params, num_labels, *, mxu_dtype=jnp.float32):
    """mxu_dtype=bfloat16 mirrors the kernel's bf16-in / f32-accumulate matmuls."""
    H = params["b_img"].shape[0]
    T = num_labels

    def mm(a, b):
        return jnp.dot(a.astype(mxu_dtype), b.astype(mxu_dtype),
                       preferred_element_type=jnp.float32)

    h0 = mm(cnn_features, params["W_img"].T) + params["b_img"]
    c0 = jnp.zeros_like(h0)

    def run_dir(whh, bias):
        whh_t = whh.T
        def step(carry, _):
            h, c = carry
            gates = mm(h, whh_t) + bias
            i = jax.nn.sigmoid(gates[:, 0 * H:1 * H])
            f = jax.nn.sigmoid(gates[:, 1 * H:2 * H])
            g = jnp.tanh(gates[:, 2 * H:3 * H])
            o = jax.nn.sigmoid(gates[:, 3 * H:4 * H])
            c = f * c + i * g
            h = o * jnp.tanh(c)
            return (h, c), h
        _, hs = lax.scan(step, (h0, c0), None, length=T)
        return hs                                            # (T, B, H)

    hs_f = run_dir(params["W_hh_f"], params["b_ih_f"] + params["b_hh_f"])
    hs_b = run_dir(params["W_hh_b"], params["b_ih_b"] + params["b_hh_b"])[::-1]
    return jnp.concatenate([hs_f, hs_b], axis=-1).transpose(1, 0, 2)


def init_params(key, hidden_size, cnn_output_size):
    """Deterministic synthetic parameters (PyTorch-style uniform bounds)."""
    H, C = hidden_size, cnn_output_size
    ks = jax.random.split(key, 8)
    k_lin = 1.0 / jnp.sqrt(C)
    k_rnn = 1.0 / jnp.sqrt(H)
    u = lambda k, shape, b: jax.random.uniform(k, shape, jnp.float32, -b, b)
    return {
        "W_img": u(ks[0], (H, C), k_lin),
        "b_img": u(ks[1], (H,), k_lin),
        "W_hh_f": u(ks[2], (4 * H, H), k_rnn),
        "b_ih_f": u(ks[3], (4 * H,), k_rnn),
        "b_hh_f": u(ks[4], (4 * H,), k_rnn),
        "W_hh_b": u(ks[5], (4 * H, H), k_rnn),
        "b_ih_b": u(ks[6], (4 * H,), k_rnn),
        "b_hh_b": u(ks[7], (4 * H,), k_rnn),
        # weight_ih (4H, 1) per direction omitted: multiplied by zero input.
        # linear_final is unused in DecoderBinaryRNN.forward (returns hiddens).
    }


if __name__ == "__main__":
    B = 2            # batch
    C = 64           # cnn_output_size
    H = 32           # hidden_size
    NUM_LABELS = 8   # sequence length of the zero input

    key = jax.random.PRNGKey(0)
    k_feat, k_par = jax.random.split(key)
    cnn_features = jax.random.normal(k_feat, (B, C), jnp.float32)
    params = init_params(k_par, H, C)

    prepped = prepare_decoder_params(params)   # one-time packing, off hot path

    hiddens = decoder_binary_rnn_forward(cnn_features, prepped,
                                         num_labels=NUM_LABELS)
    hiddens = jax.block_until_ready(hiddens)
    assert hiddens.shape == (B, NUM_LABELS, 2 * H), hiddens.shape

    # Tight check vs. a reference using the same bf16-operand / f32-accumulate
    # matmul convention as the kernel.
    ref_bf16 = _reference_forward(cnn_features, params, NUM_LABELS,
                                  mxu_dtype=jnp.bfloat16)
    assert jnp.allclose(hiddens, ref_bf16, atol=1e-3, rtol=1e-3), (
        float(jnp.max(jnp.abs(hiddens - ref_bf16))))

    # Loose check vs. the pure-f32 reference (bounds the bf16-operand error).
    ref_f32 = _reference_forward(cnn_features, params, NUM_LABELS,
                                 mxu_dtype=jnp.float32)
    assert jnp.allclose(hiddens, ref_f32, atol=3e-2, rtol=3e-2), (
        float(jnp.max(jnp.abs(hiddens - ref_f32))))

    print("KERNEL_OK")
</pallas_src>

<mosaic_0001>
module attributes {stable_mosaic.version = 11 : i64} {
  func.func @_decoder_bilstm_kernel(%arg0: memref<2x64xbf16, #tpu.memory_space<vmem>>, %arg1: memref<64x64xbf16, #tpu.memory_space<vmem>>, %arg2: memref<1x64xf32, #tpu.memory_space<vmem>>, %arg3: memref<64x256xbf16, #tpu.memory_space<vmem>>, %arg4: memref<1x256xf32, #tpu.memory_space<vmem>>, %arg5: memref<2x512xf32, #tpu.memory_space<vmem>>) attributes {dimension_semantics = [], scalar_prefetch = 0 : i64, scratch_operands = 0 : i64, tpu.core_type = #tpu.core_type<tc>} {
    %c0 = arith.constant 0 : index
    %c0_0 = arith.constant 0 : index
    %0 = vector.load %arg0[%c0, %c0_0] : memref<2x64xbf16, #tpu.memory_space<vmem>>, vector<2x64xbf16>
    %c0_1 = arith.constant 0 : index
    %c0_2 = arith.constant 0 : index
    %1 = vector.load %arg1[%c0_1, %c0_2] : memref<64x64xbf16, #tpu.memory_space<vmem>>, vector<64x64xbf16>
    %cst = arith.constant dense<0.000000e+00> : vector<2x64xf32>
    %2 = tpu.matmul %0, %1, %cst {dimension_numbers = #tpu.dot_dimension_numbers<[1], [0], [0], [1], [0, 0, 1, 1], [], []>} : vector<2x64xbf16>, vector<64x64xbf16>, vector<2x64xf32> -> vector<2x64xf32>
    %c0_3 = arith.constant 0 : index
    %c0_4 = arith.constant 0 : index
    %3 = vector.load %arg2[%c0_3, %c0_4] : memref<1x64xf32, #tpu.memory_space<vmem>>, vector<1x64xf32>
    %4 = vector.broadcast %3 : vector<1x64xf32> to vector<2x64xf32>
    %5 = arith.addf %2, %4 : vector<2x64xf32>
    %cst_5 = arith.constant 0.000000e+00 : f32
    %6 = vector.broadcast %cst_5 : f32 to vector<2x64xf32>
    %c0_6 = arith.constant 0 : index
    %c0_7 = arith.constant 0 : index
    %7 = vector.load %arg3[%c0_6, %c0_7] : memref<64x256xbf16, #tpu.memory_space<vmem>>, vector<64x256xbf16>
    %c0_8 = arith.constant 0 : index
    %c0_9 = arith.constant 0 : index
    %8 = vector.load %arg4[%c0_8, %c0_9] : memref<1x256xf32, #tpu.memory_space<vmem>>, vector<1x256xf32>
    %9 = arith.truncf %5 : vector<2x64xf32> to vector<2x64xbf16>
    %cst_10 = arith.constant dense<0.000000e+00> : vector<2x256xf32>
    %10 = tpu.matmul %9, %7, %cst_10 {dimension_numbers = #tpu.dot_dimension_numbers<[1], [0], [0], [1], [0, 0, 1, 1], [], []>} : vector<2x64xbf16>, vector<64x256xbf16>, vector<2x256xf32> -> vector<2x256xf32>
    %11 = vector.broadcast %8 : vector<1x256xf32> to vector<2x256xf32>
    %12 = arith.addf %10, %11 : vector<2x256xf32>
    %13 = vector.extract_strided_slice %12 {offsets = [0, 0], sizes = [2, 64], strides = [1, 1]} : vector<2x256xf32> to vector<2x64xf32>
    %14 = arith.negf %13 : vector<2x64xf32>
    %15 = math.exp %14 : vector<2x64xf32>
    %cst_11 = arith.constant 1.000000e+00 : f32
    %16 = vector.broadcast %cst_11 : f32 to vector<2x64xf32>
    %17 = arith.addf %16, %15 : vector<2x64xf32>
    %18 = arith.divf %16, %17 : vector<2x64xf32>
    %19 = vector.extract_strided_slice %12 {offsets = [0, 64], sizes = [2, 64], strides = [1, 1]} : vector<2x256xf32> to vector<2x64xf32>
    %20 = arith.negf %19 : vector<2x64xf32>
    %21 = math.exp %20 : vector<2x64xf32>
    %cst_12 = arith.constant 1.000000e+00 : f32
    %22 = vector.broadcast %cst_12 : f32 to vector<2x64xf32>
    %23 = arith.addf %22, %21 : vector<2x64xf32>
    %24 = arith.divf %22, %23 : vector<2x64xf32>
    %25 = vector.extract_strided_slice %12 {offsets = [0, 128], sizes = [2, 64], strides = [1, 1]} : vector<2x256xf32> to vector<2x64xf32>
    %26 = math.tanh %25 : vector<2x64xf32>
    %27 = vector.extract_strided_slice %12 {offsets = [0, 192], sizes = [2, 64], strides = [1, 1]} : vector<2x256xf32> to vector<2x64xf32>
    %28 = arith.negf %27 : vector<2x64xf32>
    %29 = math.exp %28 : vector<2x64xf32>
    %cst_13 = arith.constant 1.000000e+00 : f32
    %30 = vector.broadcast %cst_13 : f32 to vector<2x64xf32>
    %31 = arith.addf %30, %29 : vector<2x64xf32>
    %32 = arith.divf %30, %31 : vector<2x64xf32>
    %33 = arith.mulf %24, %6 : vector<2x64xf32>
    %34 = arith.mulf %18, %26 : vector<2x64xf32>
    %35 = arith.addf %33, %34 : vector<2x64xf32>
    %36 = math.tanh %35 : vector<2x64xf32>
    %37 = arith.mulf %32, %36 : vector<2x64xf32>
    %38 = arith.truncf %37 : vector<2x64xf32> to vector<2x64xbf16>
    %cst_14 = arith.constant dense<0.000000e+00> : vector<2x256xf32>
    %39 = tpu.matmul %38, %7, %cst_14 {dimension_numbers = #tpu.dot_dimension_numbers<[1], [0], [0], [1], [0, 0, 1, 1], [], []>} : vector<2x64xbf16>, vector<64x256xbf16>, vector<2x256xf32> -> vector<2x256xf32>
    %40 = vector.broadcast %8 : vector<1x256xf32> to vector<2x256xf32>
    %41 = arith.addf %39, %40 : vector<2x256xf32>
    %42 = vector.extract_strided_slice %41 {offsets = [0, 0], sizes = [2, 64], strides = [1, 1]} : vector<2x256xf32> to vector<2x64xf32>
    %43 = arith.negf %42 : vector<2x64xf32>
    %44 = math.exp %43 : vector<2x64xf32>
    %cst_15 = arith.constant 1.000000e+00 : f32
    %45 = vector.broadcast %cst_15 : f32 to vector<2x64xf32>
    %46 = arith.addf %45, %44 : vector<2x64xf32>
    %47 = arith.divf %45, %46 : vector<2x64xf32>
    %48 = vector.extract_strided_slice %41 {offsets = [0, 64], sizes = [2, 64], strides = [1, 1]} : vector<2x256xf32> to vector<2x64xf32>
    %49 = arith.negf %48 : vector<2x64xf32>
    %50 = math.exp %49 : vector<2x64xf32>
    %cst_16 = arith.constant 1.000000e+00 : f32
    %51 = vector.broadcast %cst_16 : f32 to vector<2x64xf32>
    %52 = arith.addf %51, %50 : vector<2x64xf32>
    %53 = arith.divf %51, %52 : vector<2x64xf32>
    %54 = vector.extract_strided_slice %41 {offsets = [0, 128], sizes = [2, 64], strides = [1, 1]} : vector<2x256xf32> to vector<2x64xf32>
    %55 = math.tanh %54 : vector<2x64xf32>
    %56 = vector.extract_strided_slice %41 {offsets = [0, 192], sizes = [2, 64], strides = [1, 1]} : vector<2x256xf32> to vector<2x64xf32>
    %57 = arith.negf %56 : vector<2x64xf32>
    %58 = math.exp %57 : vector<2x64xf32>
    %cst_17 = arith.constant 1.000000e+00 : f32
    %59 = vector.broadcast %cst_17 : f32 to vector<2x64xf32>
    %60 = arith.addf %59, %58 : vector<2x64xf32>
    %61 = arith.divf %59, %60 : vector<2x64xf32>
    %62 = arith.mulf %53, %35 : vector<2x64xf32>
    %63 = arith.mulf %47, %55 : vector<2x64xf32>
    %64 = arith.addf %62, %63 : vector<2x64xf32>
    %65 = math.tanh %64 : vector<2x64xf32>
    %66 = arith.mulf %61, %65 : vector<2x64xf32>
    %67 = arith.truncf %66 : vector<2x64xf32> to vector<2x64xbf16>
    %cst_18 = arith.constant dense<0.000000e+00> : vector<2x256xf32>
    %68 = tpu.matmul %67, %7, %cst_18 {dimension_numbers = #tpu.dot_dimension_numbers<[1], [0], [0], [1], [0, 0, 1, 1], [], []>} : vector<2x64xbf16>, vector<64x256xbf16>, vector<2x256xf32> -> vector<2x256xf32>
    %69 = vector.broadcast %8 : vector<1x256xf32> to vector<2x256xf32>
    %70 = arith.addf %68, %69 : vector<2x256xf32>
    %71 = vector.extract_strided_slice %70 {offsets = [0, 0], sizes = [2, 64], strides = [1, 1]} : vector<2x256xf32> to vector<2x64xf32>
    %72 = arith.negf %71 : vector<2x64xf32>
    %73 = math.exp %72 : vector<2x64xf32>
    %cst_19 = arith.constant 1.000000e+00 : f32
    %74 = vector.broadcast %cst_19 : f32 to vector<2x64xf32>
    %75 = arith.addf %74, %73 : vector<2x64xf32>
    %76 = arith.divf %74, %75 : vector<2x64xf32>
    %77 = vector.extract_strided_slice %70 {offsets = [0, 64], sizes = [2, 64], strides = [1, 1]} : vector<2x256xf32> to vector<2x64xf32>
    %78 = arith.negf %77 : vector<2x64xf32>
    %79 = math.exp %78 : vector<2x64xf32>
    %cst_20 = arith.constant 1.000000e+00 : f32
    %80 = vector.broadcast %cst_20 : f32 to vector<2x64xf32>
    %81 = arith.addf %80, %79 : vector<2x64xf32>
    %82 = arith.divf %80, %81 : vector<2x64xf32>
    %83 = vector.extract_strided_slice %70 {offsets = [0, 128], sizes = [2, 64], strides = [1, 1]} : vector<2x256xf32> to vector<2x64xf32>
    %84 = math.tanh %83 : vector<2x64xf32>
    %85 = vector.extract_strided_slice %70 {offsets = [0, 192], sizes = [2, 64], strides = [1, 1]} : vector<2x256xf32> to vector<2x64xf32>
    %86 = arith.negf %85 : vector<2x64xf32>
    %87 = math.exp %86 : vector<2x64xf32>
    %cst_21 = arith.constant 1.000000e+00 : f32
    %88 = vector.broadcast %cst_21 : f32 to vector<2x64xf32>
    %89 = arith.addf %88, %87 : vector<2x64xf32>
    %90 = arith.divf %88, %89 : vector<2x64xf32>
    %91 = arith.mulf %82, %64 : vector<2x64xf32>
    %92 = arith.mulf %76, %84 : vector<2x64xf32>
    %93 = arith.addf %91, %92 : vector<2x64xf32>
    %94 = math.tanh %93 : vector<2x64xf32>
    %95 = arith.mulf %90, %94 : vector<2x64xf32>
    %96 = arith.truncf %95 : vector<2x64xf32> to vector<2x64xbf16>
    %cst_22 = arith.constant dense<0.000000e+00> : vector<2x256xf32>
    %97 = tpu.matmul %96, %7, %cst_22 {dimension_numbers = #tpu.dot_dimension_numbers<[1], [0], [0], [1], [0, 0, 1, 1], [], []>} : vector<2x64xbf16>, vector<64x256xbf16>, vector<2x256xf32> -> vector<2x256xf32>
    %98 = vector.broadcast %8 : vector<1x256xf32> to vector<2x256xf32>
    %99 = arith.addf %97, %98 : vector<2x256xf32>
    %100 = vector.extract_strided_slice %99 {offsets = [0, 0], sizes = [2, 64], strides = [1, 1]} : vector<2x256xf32> to vector<2x64xf32>
    %101 = arith.negf %100 : vector<2x64xf32>
    %102 = math.exp %101 : vector<2x64xf32>
    %cst_23 = arith.constant 1.000000e+00 : f32
    %103 = vector.broadcast %cst_23 : f32 to vector<2x64xf32>
    %104 = arith.addf %103, %102 : vector<2x64xf32>
    %105 = arith.divf %103, %104 : vector<2x64xf32>
    %106 = vector.extract_strided_slice %99 {offsets = [0, 64], sizes = [2, 64], strides = [1, 1]} : vector<2x256xf32> to vector<2x64xf32>
    %107 = arith.negf %106 : vector<2x64xf32>
    %108 = math.exp %107 : vector<2x64xf32>
    %cst_24 = arith.constant 1.000000e+00 : f32
    %109 = vector.broadcast %cst_24 : f32 to vector<2x64xf32>
    %110 = arith.addf %109, %108 : vector<2x64xf32>
    %111 = arith.divf %109, %110 : vector<2x64xf32>
    %112 = vector.extract_strided_slice %99 {offsets = [0, 128], sizes = [2, 64], strides = [1, 1]} : vector<2x256xf32> to vector<2x64xf32>
    %113 = math.tanh %112 : vector<2x64xf32>
    %114 = vector.extract_strided_slice %99 {offsets = [0, 192], sizes = [2, 64], strides = [1, 1]} : vector<2x256xf32> to vector<2x64xf32>
    %115 = arith.negf %114 : vector<2x64xf32>
    %116 = math.exp %115 : vector<2x64xf32>
    %cst_25 = arith.constant 1.000000e+00 : f32
    %117 = vector.broadcast %cst_25 : f32 to vector<2x64xf32>
    %118 = arith.addf %117, %116 : vector<2x64xf32>
    %119 = arith.divf %117, %118 : vector<2x64xf32>
    %120 = arith.mulf %111, %93 : vector<2x64xf32>
    %121 = arith.mulf %105, %113 : vector<2x64xf32>
    %122 = arith.addf %120, %121 : vector<2x64xf32>
    %123 = math.tanh %122 : vector<2x64xf32>
    %124 = arith.mulf %119, %123 : vector<2x64xf32>
    %125 = arith.truncf %124 : vector<2x64xf32> to vector<2x64xbf16>
    %cst_26 = arith.constant dense<0.000000e+00> : vector<2x256xf32>
    %126 = tpu.matmul %125, %7, %cst_26 {dimension_numbers = #tpu.dot_dimension_numbers<[1], [0], [0], [1], [0, 0, 1, 1], [], []>} : vector<2x64xbf16>, vector<64x256xbf16>, vector<2x256xf32> -> vector<2x256xf32>
    %127 = vector.broadcast %8 : vector<1x256xf32> to vector<2x256xf32>
    %128 = arith.addf %126, %127 : vector<2x256xf32>
    %129 = vector.extract_strided_slice %128 {offsets = [0, 0], sizes = [2, 64], strides = [1, 1]} : vector<2x256xf32> to vector<2x64xf32>
    %130 = arith.negf %129 : vector<2x64xf32>
    %131 = math.exp %130 : vector<2x64xf32>
    %cst_27 = arith.constant 1.000000e+00 : f32
    %132 = vector.broadcast %cst_27 : f32 to vector<2x64xf32>
    %133 = arith.addf %132, %131 : vector<2x64xf32>
    %134 = arith.divf %132, %133 : vector<2x64xf32>
    %135 = vector.extract_strided_slice %128 {offsets = [0, 64], sizes = [2, 64], strides = [1, 1]} : vector<2x256xf32> to vector<2x64xf32>
    %136 = arith.negf %135 : vector<2x64xf32>
    %137 = math.exp %136 : vector<2x64xf32>
    %cst_28 = arith.constant 1.000000e+00 : f32
    %138 = vector.broadcast %cst_28 : f32 to vector<2x64xf32>
    %139 = arith.addf %138, %137 : vector<2x64xf32>
    %140 = arith.divf %138, %139 : vector<2x64xf32>
    %141 = vector.extract_strided_slice %128 {offsets = [0, 128], sizes = [2, 64], strides = [1, 1]} : vector<2x256xf32> to vector<2x64xf32>
    %142 = math.tanh %141 : vector<2x64xf32>
    %143 = vector.extract_strided_slice %128 {offsets = [0, 192], sizes = [2, 64], strides = [1, 1]} : vector<2x256xf32> to vector<2x64xf32>
    %144 = arith.negf %143 : vector<2x64xf32>
    %145 = math.exp %144 : vector<2x64xf32>
    %cst_29 = arith.constant 1.000000e+00 : f32
    %146 = vector.broadcast %cst_29 : f32 to vector<2x64xf32>
    %147 = arith.addf %146, %145 : vector<2x64xf32>
    %148 = arith.divf %146, %147 : vector<2x64xf32>
    %149 = arith.mulf %140, %122 : vector<2x64xf32>
    %150 = arith.mulf %134, %142 : vector<2x64xf32>
    %151 = arith.addf %149, %150 : vector<2x64xf32>
    %152 = math.tanh %151 : vector<2x64xf32>
    %153 = arith.mulf %148, %152 : vector<2x64xf32>
    %154 = arith.truncf %153 : vector<2x64xf32> to vector<2x64xbf16>
    %cst_30 = arith.constant dense<0.000000e+00> : vector<2x256xf32>
    %155 = tpu.matmul %154, %7, %cst_30 {dimension_numbers = #tpu.dot_dimension_numbers<[1], [0], [0], [1], [0, 0, 1, 1], [], []>} : vector<2x64xbf16>, vector<64x256xbf16>, vector<2x256xf32> -> vector<2x256xf32>
    %156 = vector.broadcast %8 : vector<1x256xf32> to vector<2x256xf32>
    %157 = arith.addf %155, %156 : vector<2x256xf32>
    %158 = vector.extract_strided_slice %157 {offsets = [0, 0], sizes = [2, 64], strides = [1, 1]} : vector<2x256xf32> to vector<2x64xf32>
    %159 = arith.negf %158 : vector<2x64xf32>
    %160 = math.exp %159 : vector<2x64xf32>
    %cst_31 = arith.constant 1.000000e+00 : f32
    %161 = vector.broadcast %cst_31 : f32 to vector<2x64xf32>
    %162 = arith.addf %161, %160 : vector<2x64xf32>
    %163 = arith.divf %161, %162 : vector<2x64xf32>
    %164 = vector.extract_strided_slice %157 {offsets = [0, 64], sizes = [2, 64], strides = [1, 1]} : vector<2x256xf32> to vector<2x64xf32>
    %165 = arith.negf %164 : vector<2x64xf32>
    %166 = math.exp %165 : vector<2x64xf32>
    %cst_32 = arith.constant 1.000000e+00 : f32
    %167 = vector.broadcast %cst_32 : f32 to vector<2x64xf32>
    %168 = arith.addf %167, %166 : vector<2x64xf32>
    %169 = arith.divf %167, %168 : vector<2x64xf32>
    %170 = vector.extract_strided_slice %157 {offsets = [0, 128], sizes = [2, 64], strides = [1, 1]} : vector<2x256xf32> to vector<2x64xf32>
    %171 = math.tanh %170 : vector<2x64xf32>
    %172 = vector.extract_strided_slice %157 {offsets = [0, 192], sizes = [2, 64], strides = [1, 1]} : vector<2x256xf32> to vector<2x64xf32>
    %173 = arith.negf %172 : vector<2x64xf32>
    %174 = math.exp %173 : vector<2x64xf32>
    %cst_33 = arith.constant 1.000000e+00 : f32
    %175 = vector.broadcast %cst_33 : f32 to vector<2x64xf32>
    %176 = arith.addf %175, %174 : vector<2x64xf32>
    %177 = arith.divf %175, %176 : vector<2x64xf32>
    %178 = arith.mulf %169, %151 : vector<2x64xf32>
    %179 = arith.mulf %163, %171 : vector<2x64xf32>
    %180 = arith.addf %178, %179 : vector<2x64xf32>
    %181 = math.tanh %180 : vector<2x64xf32>
    %182 = arith.mulf %177, %181 : vector<2x64xf32>
    %183 = arith.truncf %182 : vector<2x64xf32> to vector<2x64xbf16>
    %cst_34 = arith.constant dense<0.000000e+00> : vector<2x256xf32>
    %184 = tpu.matmul %183, %7, %cst_34 {dimension_numbers = #tpu.dot_dimension_numbers<[1], [0], [0], [1], [0, 0, 1, 1], [], []>} : vector<2x64xbf16>, vector<64x256xbf16>, vector<2x256xf32> -> vector<2x256xf32>
    %185 = vector.broadcast %8 : vector<1x256xf32> to vector<2x256xf32>
    %186 = arith.addf %184, %185 : vector<2x256xf32>
    %187 = vector.extract_strided_slice %186 {offsets = [0, 0], sizes = [2, 64], strides = [1, 1]} : vector<2x256xf32> to vector<2x64xf32>
    %188 = arith.negf %187 : vector<2x64xf32>
    %189 = math.exp %188 : vector<2x64xf32>
    %cst_35 = arith.constant 1.000000e+00 : f32
    %190 = vector.broadcast %cst_35 : f32 to vector<2x64xf32>
    %191 = arith.addf %190, %189 : vector<2x64xf32>
    %192 = arith.divf %190, %191 : vector<2x64xf32>
    %193 = vector.extract_strided_slice %186 {offsets = [0, 64], sizes = [2, 64], strides = [1, 1]} : vector<2x256xf32> to vector<2x64xf32>
    %194 = arith.negf %193 : vector<2x64xf32>
    %195 = math.exp %194 : vector<2x64xf32>
    %cst_36 = arith.constant 1.000000e+00 : f32
    %196 = vector.broadcast %cst_36 : f32 to vector<2x64xf32>
    %197 = arith.addf %196, %195 : vector<2x64xf32>
    %198 = arith.divf %196, %197 : vector<2x64xf32>
    %199 = vector.extract_strided_slice %186 {offsets = [0, 128], sizes = [2, 64], strides = [1, 1]} : vector<2x256xf32> to vector<2x64xf32>
    %200 = math.tanh %199 : vector<2x64xf32>
    %201 = vector.extract_strided_slice %186 {offsets = [0, 192], sizes = [2, 64], strides = [1, 1]} : vector<2x256xf32> to vector<2x64xf32>
    %202 = arith.negf %201 : vector<2x64xf32>
    %203 = math.exp %202 : vector<2x64xf32>
    %cst_37 = arith.constant 1.000000e+00 : f32
    %204 = vector.broadcast %cst_37 : f32 to vector<2x64xf32>
    %205 = arith.addf %204, %203 : vector<2x64xf32>
    %206 = arith.divf %204, %205 : vector<2x64xf32>
    %207 = arith.mulf %198, %180 : vector<2x64xf32>
    %208 = arith.mulf %192, %200 : vector<2x64xf32>
    %209 = arith.addf %207, %208 : vector<2x64xf32>
    %210 = math.tanh %209 : vector<2x64xf32>
    %211 = arith.mulf %206, %210 : vector<2x64xf32>
    %212 = arith.truncf %211 : vector<2x64xf32> to vector<2x64xbf16>
    %cst_38 = arith.constant dense<0.000000e+00> : vector<2x256xf32>
    %213 = tpu.matmul %212, %7, %cst_38 {dimension_numbers = #tpu.dot_dimension_numbers<[1], [0], [0], [1], [0, 0, 1, 1], [], []>} : vector<2x64xbf16>, vector<64x256xbf16>, vector<2x256xf32> -> vector<2x256xf32>
    %214 = vector.broadcast %8 : vector<1x256xf32> to vector<2x256xf32>
    %215 = arith.addf %213, %214 : vector<2x256xf32>
    %216 = vector.extract_strided_slice %215 {offsets = [0, 0], sizes = [2, 64], strides = [1, 1]} : vector<2x256xf32> to vector<2x64xf32>
    %217 = arith.negf %216 : vector<2x64xf32>
    %218 = math.exp %217 : vector<2x64xf32>
    %cst_39 = arith.constant 1.000000e+00 : f32
    %219 = vector.broadcast %cst_39 : f32 to vector<2x64xf32>
    %220 = arith.addf %219, %218 : vector<2x64xf32>
    %221 = arith.divf %219, %220 : vector<2x64xf32>
    %222 = vector.extract_strided_slice %215 {offsets = [0, 64], sizes = [2, 64], strides = [1, 1]} : vector<2x256xf32> to vector<2x64xf32>
    %223 = arith.negf %222 : vector<2x64xf32>
    %224 = math.exp %223 : vector<2x64xf32>
    %cst_40 = arith.constant 1.000000e+00 : f32
    %225 = vector.broadcast %cst_40 : f32 to vector<2x64xf32>
    %226 = arith.addf %225, %224 : vector<2x64xf32>
    %227 = arith.divf %225, %226 : vector<2x64xf32>
    %228 = vector.extract_strided_slice %215 {offsets = [0, 128], sizes = [2, 64], strides = [1, 1]} : vector<2x256xf32> to vector<2x64xf32>
    %229 = math.tanh %228 : vector<2x64xf32>
    %230 = vector.extract_strided_slice %215 {offsets = [0, 192], sizes = [2, 64], strides = [1, 1]} : vector<2x256xf32> to vector<2x64xf32>
    %231 = arith.negf %230 : vector<2x64xf32>
    %232 = math.exp %231 : vector<2x64xf32>
    %cst_41 = arith.constant 1.000000e+00 : f32
    %233 = vector.broadcast %cst_41 : f32 to vector<2x64xf32>
    %234 = arith.addf %233, %232 : vector<2x64xf32>
    %235 = arith.divf %233, %234 : vector<2x64xf32>
    %236 = arith.mulf %227, %209 : vector<2x64xf32>
    %237 = arith.mulf %221, %229 : vector<2x64xf32>
    %238 = arith.addf %236, %237 : vector<2x64xf32>
    %239 = math.tanh %238 : vector<2x64xf32>
    %240 = arith.mulf %235, %239 : vector<2x64xf32>
    %241 = tpu.iota {dimensions = array<i32: 1>} : vector<2x64xi32>
    %c32_i32 = arith.constant 32 : i32
    %242 = vector.broadcast %c32_i32 : i32 to vector<2x64xi32>
    %243 = arith.cmpi slt, %241, %242 : vector<2x64xi32>
    %244 = arith.select %243, %37, %240 : vector<2x64xi1>, vector<2x64xf32>
    %245 = arith.select %243, %66, %211 : vector<2x64xi1>, vector<2x64xf32>
    %246 = arith.select %243, %95, %182 : vector<2x64xi1>, vector<2x64xf32>
    %247 = arith.select %243, %124, %153 : vector<2x64xi1>, vector<2x64xf32>
    %248 = arith.select %243, %153, %124 : vector<2x64xi1>, vector<2x64xf32>
    %249 = arith.select %243, %182, %95 : vector<2x64xi1>, vector<2x64xf32>
    %250 = arith.select %243, %211, %66 : vector<2x64xi1>, vector<2x64xf32>
    %251 = arith.select %243, %240, %37 : vector<2x64xi1>, vector<2x64xf32>
    %252 = tpu.concatenate %244, %245, %246, %247, %248, %249, %250, %251 in 1 : vector<2x64xf32>, vector<2x64xf32>, vector<2x64xf32>, vector<2x64xf32>, vector<2x64xf32>, vector<2x64xf32>, vector<2x64xf32>, vector<2x64xf32> -> vector<2x512xf32>
    %c0_42 = arith.constant 0 : index
    %c0_43 = arith.constant 0 : index
    %253 = vector.load %arg5[%c0_42, %c0_43] : memref<2x512xf32, #tpu.memory_space<vmem>>, vector<2x512xf32>
    tpu.vector_store %arg5[%c0_42, %c0_43], %252 {strides = array<i32>} : memref<2x512xf32, #tpu.memory_space<vmem>>, vector<2x512xf32>,
    return
  }
}

</mosaic_0001>

<llo_original>
// kernel: decoder_binary_rnn_forward.1
$region0: #{decoder_binary_rnn_forward.1}
  #allocation0 [shape = 'u32[]', space=smem, size = 0x4, offset = 0x4, fixed_abs, tag = 'smem constant byte address 0x4 - core index']
  #allocation1 [shape = 'u32[144,128]{1,0:T(1,128)}', space=vmem, size = 0x12000, scoped, tag = 'internal scratch']
  %s0 = inlined_call_operand.vmem [shape: bf16[2,64], index: 0, kind: input, shape index: {}]
  %s1 = inlined_call_operand.hbm [shape: bf16[64,64], index: 1, kind: input, shape index: {}]
  %s2 = inlined_call_operand.vmem [shape: f32[1,64], index: 2, kind: input, shape index: {}]
  %s3 = inlined_call_operand.hbm [shape: bf16[64,256], index: 3, kind: input, shape index: {}]
  %s4 = inlined_call_operand.vmem [shape: f32[1,256], index: 4, kind: input, shape index: {}]
  %s5 = inlined_call_operand.vmem [shape: f32[2,512], index: 5, kind: output, shape index: {}]
  %s6 = sld [smem:[#allocation0]]
  $region38: #{decoder_binary_rnn_forward.1} parent=0
    _
  %s8 = ssub.s32 1, %s6
  %s9 = scalar_select 0, %s8, %s6
  $region1: #{decoder_binary_rnn_forward.1} parent=0
    #allocation2 [shape = 'u8[16384]{0}', space=vmem, size = 0x4000, scoped, tag = 'input window, operand 1, single buffered']
    #allocation3 [shape = 's32[1]{0}', space=sflag, size = 0x4, scoped, tag = 'scoped memory for decoder_binary_rnn_forward.1']
    #allocation4 [shape = 'u8[32768]{0}', space=vmem, size = 0x8000, scoped, tag = 'input window, operand 3, single buffered']
    #allocation5 [shape = 's32[1]{0}', space=sflag, size = 0x4, scoped, tag = 'scoped memory for decoder_binary_rnn_forward.1']
    %10 = vsyncpa [#allocation3], 0
    %11 = vsyncpa [#allocation5], 0
    // Predicated region
    $region2: #{decoder_binary_rnn_forward.1} parent=1 // pred_check
      _
    $region3: #{decoder_binary_rnn_forward.1} parent=1 // pred_check_branch
      %13 = sbr.rel (0) target = $region5
    $region4: #{decoder_binary_rnn_forward.1} parent=1 // pred_region
      _
    $region5: #{decoder_binary_rnn_forward.1} parent=1 // pred_fallthru
      _
    // Predicated region
    $region6: #{decoder_binary_rnn_forward.1} parent=1 // pred_check
      _
    $region7: #{decoder_binary_rnn_forward.1} parent=1 // pred_check_branch
      %15 = sbr.rel (0) target = $region9
    $region8: #{decoder_binary_rnn_forward.1} parent=1 // pred_region
      %s17 = ssub.s32 512, 512
      %18 = vsyncadd [#allocation3], %s17
      %s19 = sshll.u32 [#allocation2], 4
      %s20 = int_to_ptr.vmem [resolvable:$true] %s19
      %25 = dma.hbm_to_vmem [thread:$0]  %s1, 512, %s20, [#allocation3], 64, 64, 4
    $region9: #{decoder_binary_rnn_forward.1} parent=1 // pred_fallthru
      _
    // Predicated region
    $region10: #{decoder_binary_rnn_forward.1} parent=1 // pred_check
      _
    $region11: #{decoder_binary_rnn_forward.1} parent=1 // pred_check_branch
      %27 = sbr.rel (0) target = $region13
    $region12: #{decoder_binary_rnn_forward.1} parent=1 // pred_region
      _
    $region13: #{decoder_binary_rnn_forward.1} parent=1 // pred_fallthru
      _
    // Predicated region
    $region14: #{decoder_binary_rnn_forward.1} parent=1 // pred_check
      _
    $region15: #{decoder_binary_rnn_forward.1} parent=1 // pred_check_branch
      %29 = sbr.rel (0) target = $region17
    $region16: #{decoder_binary_rnn_forward.1} parent=1 // pred_region
      %s31 = ssub.s32 1024, 1024
      %32 = vsyncadd [#allocation5], %s31
      %s33 = sshll.u32 [#allocation4], 4
      %s34 = int_to_ptr.vmem [resolvable:$true] %s33
      %39 = dma.hbm_to_vmem [thread:$0]  %s3, 1024, %s34, [#allocation5], 128, 128, 8
    $region17: #{decoder_binary_rnn_forward.1} parent=1 // pred_fallthru
      _
    // Predicated region
    $region18: #{decoder_binary_rnn_forward.1} parent=1 // pred_check
      _
    $region19: #{decoder_binary_rnn_forward.1} parent=1 // pred_check_branch
      %41 = sbr.rel (0) target = $region21
    $region20: #{decoder_binary_rnn_forward.1} parent=1 // pred_region
      _
    $region21: #{decoder_binary_rnn_forward.1} parent=1 // pred_fallthru
      _
    // Predicated region
    $region22: #{decoder_binary_rnn_forward.1} parent=1 // pred_check
      _
    $region23: #{decoder_binary_rnn_forward.1} parent=1 // pred_check_branch
      %43 = sbr.rel (0) target = $region25
    $region24: #{decoder_binary_rnn_forward.1} parent=1 // pred_region
      %44 = dma.done [#allocation3], 512
    $region25: #{decoder_binary_rnn_forward.1} parent=1 // pred_fallthru
      _
    // Predicated region
    $region26: #{decoder_binary_rnn_forward.1} parent=1 // pred_check
      _
    $region27: #{decoder_binary_rnn_forward.1} parent=1 // pred_check_branch
      %46 = sbr.rel (0) target = $region29
    $region28: #{decoder_binary_rnn_forward.1} parent=1 // pred_region
      %47 = dma.done [#allocation5], 1024
    $region29: #{decoder_binary_rnn_forward.1} parent=1 // pred_fallthru
      _
    %v49 = vld [vmem:[%s0] sm:$0x1]
    %v50 = vld [vmem:[#allocation2] sm:$0xf]
    %v51 = vld [vmem:[#allocation2 + $0x4] sm:$0xf]
    %v52 = vld [vmem:[#allocation2 + $0x8] sm:$0xf]
    %v53 = vld [vmem:[#allocation2 + $0xc] sm:$0xf]
    %v54 = vld [vmem:[#allocation2 + $0x10] sm:$0xf]
    %v55 = vld [vmem:[#allocation2 + $0x14] sm:$0xf]
    %v56 = vld [vmem:[#allocation2 + $0x18] sm:$0xf]
    %v57 = vld [vmem:[#allocation2 + $0x1c] sm:$0xf]
    %v58 = vld [vmem:[%s2] sm:$0x1]
    %v60 = vlaneseq
    %v61 = vshrl.u32 %v60, 7
    %v62 = vsub.s32 0, %v61
    %v63 = vrot.slane %v58, %v62
    %v73 = vunpack.c.l.b16 %v50
    %v74 = vunpack.c.l.b16 %v51
    %v75 = vunpack.c.l.b16 %v52
    %v76 = vunpack.c.l.b16 %v53
    %v77 = vunpack.c.l.b16 %v54
    %v78 = vunpack.c.l.b16 %v55
    %v79 = vunpack.c.l.b16 %v56
    %v80 = vunpack.c.l.b16 %v57
    %v81 = vpack.c.b16 %v74, %v73
    %v82 = vpack.c.b16 %v76, %v75
    %v83 = vpack.c.b16 %v78, %v77
    %v84 = vpack.c.b16 %v80, %v79
    %vm89 = vcmask 523264
    %v91 = vsel %vm89, %v49, 0
    %93 = vmatprep.subr.bf16.mxu0 0
    %94 = vmatpush1.bf16.msra.mxu0 %v81
    %95 = vmatprep.subr.bf16.mxu0 0
    %96 = vmatpush1.bf16.msra.mxu0 %v82
    %97 = vmatprep.subr.bf16.mxu0 0
    %98 = vmatpush1.bf16.msra.mxu0 %v83
    %99 = vmatprep.subr.bf16.mxu0 0
    %100 = vmatpush1.bf16.msra.mxu0 %v84
    %101 = vmatprep.subr.bf16.mxu0 0
    %102 = vmatpush1.bf16.msra.mxu0 0
    %103 = vmatprep.subr.bf16.mxu0 0
    %104 = vmatpush1.bf16.msra.mxu0 0
    %105 = vmatprep.subr.bf16.mxu0 0
    %106 = vmatpush1.bf16.msra.mxu0 0
    %107 = vmatprep.subr.bf16.mxu0 0
    %108 = vmatpush1.bf16.msra.mxu0 0
    %109 = vmatprep.subr.bf16.mxu0 0
    %110 = vmatpush1.bf16.msra.mxu0 0
    %111 = vmatprep.subr.bf16.mxu0 0
    %112 = vmatpush1.bf16.msra.mxu0 0
    %113 = vmatprep.subr.bf16.mxu0 0
    %114 = vmatpush1.bf16.msra.mxu0 0
    %115 = vmatprep.subr.bf16.mxu0 0
    %116 = vmatpush1.bf16.msra.mxu0 0
    %117 = vmatprep.subr.bf16.mxu0 0
    %118 = vmatpush1.bf16.msra.mxu0 0
    %119 = vmatprep.subr.bf16.mxu0 0
    %120 = vmatpush1.bf16.msra.mxu0 0
    %121 = vmatprep.subr.bf16.mxu0 0
    %122 = vmatpush1.bf16.msra.mxu0 0
    %123 = vmatprep.subr.bf16.mxu0 0
    %124 = vmatpush1.bf16.msra.mxu0 0
    %125 = vmatprep.mubr.bf16.mxu0 0
    %126 = vmatmul.mubr.bf16.gmra.mrb[0].mxu0 %v91
    %v127 = vpop.f32.mrb[0].mxu0
    %v128 = vadd.f32 %v63, %v127
    %v129 = vpop.f32.mrb[0].mxu0
    %v130 = vpop.f32.mrb[0].mxu0
    %v131 = vpop.f32.mrb[0].mxu0
    %132 = vdwg.mxu0
    %v133 = vld [vmem:[#allocation4] sm:$0xff]
    %v134 = vld [vmem:[#allocation4 + $0x8] sm:$0xff]
    %v135 = vld [vmem:[#allocation4 + $0x10] sm:$0xff]
    %v136 = vld [vmem:[#allocation4 + $0x18] sm:$0xff]
    %v137 = vld [vmem:[#allocation4 + $0x20] sm:$0xff]
    %v138 = vld [vmem:[#allocation4 + $0x28] sm:$0xff]
    %v139 = vld [vmem:[#allocation4 + $0x30] sm:$0xff]
    %v140 = vld [vmem:[#allocation4 + $0x38] sm:$0xff]
    %v141 = vld [vmem:[%s4] sm:$0x3]
    %v142 = vpack.c.bf16 %v128, %v128
    %v144 = vlaneseq
    %v145 = vshrl.u32 %v144, 7
    %v146 = vsub.s32 0, %v145
    %v147 = vrot.slane %v141, %v146
    %v148 = vlaneseq
    %v149 = vshrl.u32 %v148, 7
    %v150 = vsub.s32 1, %v149
    %v151 = vrot.slane %v141, %v150
    %v162 = vunpack.c.l.b16 %v133
    %v163 = vunpack.c.h.b16 %v133
    %v164 = vunpack.c.l.b16 %v134
    %v165 = vunpack.c.h.b16 %v134
    %v166 = vunpack.c.l.b16 %v135
    %v167 = vunpack.c.h.b16 %v135
    %v168 = vunpack.c.l.b16 %v136
    %v169 = vunpack.c.h.b16 %v136
    %v170 = vunpack.c.l.b16 %v137
    %v171 = vunpack.c.h.b16 %v137
    %v172 = vunpack.c.l.b16 %v138
    %v173 = vunpack.c.h.b16 %v138
    %v174 = vunpack.c.l.b16 %v139
    %v175 = vunpack.c.h.b16 %v139
    %v176 = vunpack.c.l.b16 %v140
    %v177 = vunpack.c.h.b16 %v140
    %v178 = vpack.c.b16 %v164, %v162
    %v179 = vpack.c.b16 %v165, %v163
    %v180 = vpack.c.b16 %v168, %v166
    %v181 = vpack.c.b16 %v169, %v167
    %v182 = vpack.c.b16 %v172, %v170
    %v183 = vpack.c.b16 %v173, %v171
    %v184 = vpack.c.b16 %v176, %v174
    %v185 = vpack.c.b16 %v177, %v175
    %v195 = vsel %vm89, %v142, 0
    %197 = vmatprep.subr.bf16.mxu0 %v179
    %198 = vmatpush1.bf16.msra.mxu0 %v178
    %199 = vmatprep.subr.bf16.mxu0 %v181
    %200 = vmatpush1.bf16.msra.mxu0 %v180
    %201 = vmatprep.subr.bf16.mxu0 %v183
    %202 = vmatpush1.bf16.msra.mxu0 %v182
    %203 = vmatprep.subr.bf16.mxu0 %v185
    %204 = vmatpush1.bf16.msra.mxu0 %v184
    %205 = vmatprep.subr.bf16.mxu0 0
    %206 = vmatpush1.bf16.msra.mxu0 0
    %207 = vmatprep.subr.bf16.mxu0 0
    %208 = vmatpush1.bf16.msra.mxu0 0
    %209 = vmatprep.subr.bf16.mxu0 0
    %210 = vmatpush1.bf16.msra.mxu0 0
    %211 = vmatprep.subr.bf16.mxu0 0
    %212 = vmatpush1.bf16.msra.mxu0 0
    %213 = vmatprep.subr.bf16.mxu0 0
    %214 = vmatpush1.bf16.msra.mxu0 0
    %215 = vmatprep.subr.bf16.mxu0 0
    %216 = vmatpush1.bf16.msra.mxu0 0
    %217 = vmatprep.subr.bf16.mxu0 0
    %218 = vmatpush1.bf16.msra.mxu0 0
    %219 = vmatprep.subr.bf16.mxu0 0
    %220 = vmatpush1.bf16.msra.mxu0 0
    %221 = vmatprep.subr.bf16.mxu0 0
    %222 = vmatpush1.bf16.msra.mxu0 0
    %223 = vmatprep.subr.bf16.mxu0 0
    %224 = vmatpush1.bf16.msra.mxu0 0
    %225 = vmatprep.subr.bf16.mxu0 0
    %226 = vmatpush1.bf16.msra.mxu0 0
    %227 = vmatprep.subr.bf16.mxu0 0
    %228 = vmatpush1.bf16.msra.mxu0 0
    %229 = vmatprep.mubr.bf16.mxu0 0
    %230 = vmatmul.mubr.bf16.gmra.mrb[0].mxu0 %v195
    %v231 = vpop.f32.mrb[0].mxu0
    %v232 = vadd.f32 %v147, %v231
    %v233 = vpop.f32.mrb[0].mxu0
    %v234 = vadd.f32 %v151, %v233
    %v235 = vpop.f32.mrb[0].mxu0
    %v236 = vpop.f32.mrb[0].mxu0
    %237 = vdwg.mxu0
    %v238 = vxor.u32 %v232, 2147483648
    %v239 = vmul.f32 %v238, 1.442695
    %v240 = vpow.pop %v239
    %v241 = vadd.f32 %v240, 1.0
    %v242 = vrcp.pop %v241
    %v243 = vmul.f32 1.0, %v242
    %v244 = vtanh.pop %v234
    %v245 = vxor.u32 %v234, 2147483648
    %v246 = vmul.f32 %v245, 1.442695
    %v247 = vpow.pop %v246
    %v248 = vadd.f32 %v247, 1.0
    %v249 = vrcp.pop %v248
    %v250 = vmul.f32 1.0, %v249
    %v251 = vmul.f32 %v243, 0.0
    %v252 = vmul.f32 %v243, %v244
    %254 = vrot.lane.b32.xlu0 %v252, 64
    %v255 = vpop.permute.xlu0 %254
    %v257 = vadd.f32 %v251, %v255
    %v258 = vtanh.pop %v257
    %v259 = vmul.f32 %v250, %v258
    %v260 = vpack.c.bf16 %v259, %v259
    %262 = vrot.lane.b32.xlu0 %v260, 64
    %v263 = vpop.permute.xlu0 %262
    %v265 = vsel %vm89, %v263, 0
    %267 = vmatprep.subr.bf16.mxu0 %v179
    %268 = vmatpush1.bf16.msra.mxu0 %v178
    %269 = vmatprep.subr.bf16.mxu0 %v181
    %270 = vmatpush1.bf16.msra.mxu0 %v180
    %271 = vmatprep.subr.bf16.mxu0 %v183
    %272 = vmatpush1.bf16.msra.mxu0 %v182
    %273 = vmatprep.subr.bf16.mxu0 %v185
    %274 = vmatpush1.bf16.msra.mxu0 %v184
    %275 = vmatprep.subr.bf16.mxu0 0
    %276 = vmatpush1.bf16.msra.mxu0 0
    %277 = vmatprep.subr.bf16.mxu0 0
    %278 = vmatpush1.bf16.msra.mxu0 0
    %279 = vmatprep.subr.bf16.mxu0 0
    %280 = vmatpush1.bf16.msra.mxu0 0
    %281 = vmatprep.subr.bf16.mxu0 0
    %282 = vmatpush1.bf16.msra.mxu0 0
    %283 = vmatprep.subr.bf16.mxu0 0
    %284 = vmatpush1.bf16.msra.mxu0 0
    %285 = vmatprep.subr.bf16.mxu0 0
    %286 = vmatpush1.bf16.msra.mxu0 0
    %287 = vmatprep.subr.bf16.mxu0 0
    %288 = vmatpush1.bf16.msra.mxu0 0
    %289 = vmatprep.subr.bf16.mxu0 0
    %290 = vmatpush1.bf16.msra.mxu0 0
    %291 = vmatprep.subr.bf16.mxu0 0
    %292 = vmatpush1.bf16.msra.mxu0 0
    %293 = vmatprep.subr.bf16.mxu0 0
    %294 = vmatpush1.bf16.msra.mxu0 0
    %295 = vmatprep.subr.bf16.mxu0 0
    %296 = vmatpush1.bf16.msra.mxu0 0
    %297 = vmatprep.subr.bf16.mxu0 0
    %298 = vmatpush1.bf16.msra.mxu0 0
    %299 = vmatprep.mubr.bf16.mxu0 0
    %300 = vmatmul.mubr.bf16.gmra.mrb[0].mxu0 %v265
    %v301 = vpop.f32.mrb[0].mxu0
    %v302 = vadd.f32 %v147, %v301
    %v303 = vpop.f32.mrb[0].mxu0
    %v304 = vadd.f32 %v151, %v303
    %v305 = vpop.f32.mrb[0].mxu0
    %v306 = vpop.f32.mrb[0].mxu0
    %307 = vdwg.mxu0
    %v308 = vxor.u32 %v302, 2147483648
    %v309 = vmul.f32 %v308, 1.442695
    %v310 = vpow.pop %v309
    %v311 = vadd.f32 %v310, 1.0
    %v312 = vrcp.pop %v311
    %v313 = vmul.f32 1.0, %v312
    %v314 = vtanh.pop %v304
    %v315 = vxor.u32 %v304, 2147483648
    %v316 = vmul.f32 %v315, 1.442695
    %v317 = vpow.pop %v316
    %v318 = vadd.f32 %v317, 1.0
    %v319 = vrcp.pop %v318
    %v320 = vmul.f32 1.0, %v319
    %v321 = vmul.f32 %v313, %v257
    %v322 = vmul.f32 %v313, %v314
    %324 = vrot.lane.b32.xlu0 %v322, 64
    %v325 = vpop.permute.xlu0 %324
    %v327 = vadd.f32 %v321, %v325
    %v328 = vtanh.pop %v327
    %v329 = vmul.f32 %v320, %v328
    %v330 = vpack.c.bf16 %v329, %v329
    %332 = vrot.lane.b32.xlu0 %v330, 64
    %v333 = vpop.permute.xlu0 %332
    %v335 = vsel %vm89, %v333, 0
    %337 = vmatprep.subr.bf16.mxu0 %v179
    %338 = vmatpush1.bf16.msra.mxu0 %v178
    %339 = vmatprep.subr.bf16.mxu0 %v181
    %340 = vmatpush1.bf16.msra.mxu0 %v180
    %341 = vmatprep.subr.bf16.mxu0 %v183
    %342 = vmatpush1.bf16.msra.mxu0 %v182
    %343 = vmatprep.subr.bf16.mxu0 %v185
    %344 = vmatpush1.bf16.msra.mxu0 %v184
    %345 = vmatprep.subr.bf16.mxu0 0
    %346 = vmatpush1.bf16.msra.mxu0 0
    %347 = vmatprep.subr.bf16.mxu0 0
    %348 = vmatpush1.bf16.msra.mxu0 0
    %349 = vmatprep.subr.bf16.mxu0 0
    %350 = vmatpush1.bf16.msra.mxu0 0
    %351 = vmatprep.subr.bf16.mxu0 0
    %352 = vmatpush1.bf16.msra.mxu0 0
    %353 = vmatprep.subr.bf16.mxu0 0
    %354 = vmatpush1.bf16.msra.mxu0 0
    %355 = vmatprep.subr.bf16.mxu0 0
    %356 = vmatpush1.bf16.msra.mxu0 0
    %357 = vmatprep.subr.bf16.mxu0 0
    %358 = vmatpush1.bf16.msra.mxu0 0
    %359 = vmatprep.subr.bf16.mxu0 0
    %360 = vmatpush1.bf16.msra.mxu0 0
    %361 = vmatprep.subr.bf16.mxu0 0
    %362 = vmatpush1.bf16.msra.mxu0 0
    %363 = vmatprep.subr.bf16.mxu0 0
    %364 = vmatpush1.bf16.msra.mxu0 0
    %365 = vmatprep.subr.bf16.mxu0 0
    %366 = vmatpush1.bf16.msra.mxu0 0
    %367 = vmatprep.subr.bf16.mxu0 0
    %368 = vmatpush1.bf16.msra.mxu0 0
    %369 = vmatprep.mubr.bf16.mxu0 0
    %370 = vmatmul.mubr.bf16.gmra.mrb[0].mxu0 %v335
    %v371 = vpop.f32.mrb[0].mxu0
    %v372 = vadd.f32 %v147, %v371
    %v373 = vpop.f32.mrb[0].mxu0
    %v374 = vadd.f32 %v151, %v373
    %v375 = vpop.f32.mrb[0].mxu0
    %v376 = vpop.f32.mrb[0].mxu0
    %377 = vdwg.mxu0
    %v378 = vxor.u32 %v372, 2147483648
    %v379 = vmul.f32 %v378, 1.442695
    %v380 = vpow.pop %v379
    %v381 = vadd.f32 %v380, 1.0
    %v382 = vrcp.pop %v381
    %v383 = vmul.f32 1.0, %v382
    %v384 = vtanh.pop %v374
    %v385 = vxor.u32 %v374, 2147483648
    %v386 = vmul.f32 %v385, 1.442695
    %v387 = vpow.pop %v386
    %v388 = vadd.f32 %v387, 1.0
    %v389 = vrcp.pop %v388
    %v390 = vmul.f32 1.0, %v389
    %v391 = vmul.f32 %v383, %v327
    %v392 = vmul.f32 %v383, %v384
    %394 = vrot.lane.b32.xlu0 %v392, 64
    %v395 = vpop.permute.xlu0 %394
    %v397 = vadd.f32 %v391, %v395
    %v398 = vtanh.pop %v397
    %v399 = vmul.f32 %v390, %v398
    %v400 = vpack.c.bf16 %v399, %v399
    %402 = vrot.lane.b32.xlu0 %v400, 64
    %v403 = vpop.permute.xlu0 %402
    %v405 = vsel %vm89, %v403, 0
    %407 = vmatprep.subr.bf16.mxu0 %v179
    %408 = vmatpush1.bf16.msra.mxu0 %v178
    %409 = vmatprep.subr.bf16.mxu0 %v181
    %410 = vmatpush1.bf16.msra.mxu0 %v180
    %411 = vmatprep.subr.bf16.mxu0 %v183
    %412 = vmatpush1.bf16.msra.mxu0 %v182
    %413 = vmatprep.subr.bf16.mxu0 %v185
    %414 = vmatpush1.bf16.msra.mxu0 %v184
    %415 = vmatprep.subr.bf16.mxu0 0
    %416 = vmatpush1.bf16.msra.mxu0 0
    %417 = vmatprep.subr.bf16.mxu0 0
    %418 = vmatpush1.bf16.msra.mxu0 0
    %419 = vmatprep.subr.bf16.mxu0 0
    %420 = vmatpush1.bf16.msra.mxu0 0
    %421 = vmatprep.subr.bf16.mxu0 0
    %422 = vmatpush1.bf16.msra.mxu0 0
    %423 = vmatprep.subr.bf16.mxu0 0
    %424 = vmatpush1.bf16.msra.mxu0 0
    %425 = vmatprep.subr.bf16.mxu0 0
    %426 = vmatpush1.bf16.msra.mxu0 0
    %427 = vmatprep.subr.bf16.mxu0 0
    %428 = vmatpush1.bf16.msra.mxu0 0
    %429 = vmatprep.subr.bf16.mxu0 0
    %430 = vmatpush1.bf16.msra.mxu0 0
    %431 = vmatprep.subr.bf16.mxu0 0
    %432 = vmatpush1.bf16.msra.mxu0 0
    %433 = vmatprep.subr.bf16.mxu0 0
    %434 = vmatpush1.bf16.msra.mxu0 0
    %435 = vmatprep.subr.bf16.mxu0 0
    %436 = vmatpush1.bf16.msra.mxu0 0
    %437 = vmatprep.subr.bf16.mxu0 0
    %438 = vmatpush1.bf16.msra.mxu0 0
    %439 = vmatprep.mubr.bf16.mxu0 0
    %440 = vmatmul.mubr.bf16.gmra.mrb[0].mxu0 %v405
    %v441 = vpop.f32.mrb[0].mxu0
    %v442 = vadd.f32 %v147, %v441
    %v443 = vpop.f32.mrb[0].mxu0
    %v444 = vadd.f32 %v151, %v443
    %v445 = vpop.f32.mrb[0].mxu0
    %v446 = vpop.f32.mrb[0].mxu0
    %447 = vdwg.mxu0
    %v448 = vxor.u32 %v442, 2147483648
    %v449 = vmul.f32 %v448, 1.442695
    %v450 = vpow.pop %v449
    %v451 = vadd.f32 %v450, 1.0
    %v452 = vrcp.pop %v451
    %v453 = vmul.f32 1.0, %v452
    %v454 = vtanh.pop %v444
    %v455 = vxor.u32 %v444, 2147483648
    %v456 = vmul.f32 %v455, 1.442695
    %v457 = vpow.pop %v456
    %v458 = vadd.f32 %v457, 1.0
    %v459 = vrcp.pop %v458
    %v460 = vmul.f32 1.0, %v459
    %v461 = vmul.f32 %v453, %v397
    %v462 = vmul.f32 %v453, %v454
    %464 = vrot.lane.b32.xlu0 %v462, 64
    %v465 = vpop.permute.xlu0 %464
    %v467 = vadd.f32 %v461, %v465
    %v468 = vtanh.pop %v467
    %v469 = vmul.f32 %v460, %v468
    %v470 = vpack.c.bf16 %v469, %v469
    %472 = vrot.lane.b32.xlu0 %v470, 64
    %v473 = vpop.permute.xlu0 %472
    %v475 = vsel %vm89, %v473, 0
    %477 = vmatprep.subr.bf16.mxu0 %v179
    %478 = vmatpush1.bf16.msra.mxu0 %v178
    %479 = vmatprep.subr.bf16.mxu0 %v181
    %480 = vmatpush1.bf16.msra.mxu0 %v180
    %481 = vmatprep.subr.bf16.mxu0 %v183
    %482 = vmatpush1.bf16.msra.mxu0 %v182
    %483 = vmatprep.subr.bf16.mxu0 %v185
    %484 = vmatpush1.bf16.msra.mxu0 %v184
    %485 = vmatprep.subr.bf16.mxu0 0
    %486 = vmatpush1.bf16.msra.mxu0 0
    %487 = vmatprep.subr.bf16.mxu0 0
    %488 = vmatpush1.bf16.msra.mxu0 0
    %489 = vmatprep.subr.bf16.mxu0 0
    %490 = vmatpush1.bf16.msra.mxu0 0
    %491 = vmatprep.subr.bf16.mxu0 0
    %492 = vmatpush1.bf16.msra.mxu0 0
    %493 = vmatprep.subr.bf16.mxu0 0
    %494 = vmatpush1.bf16.msra.mxu0 0
    %495 = vmatprep.subr.bf16.mxu0 0
    %496 = vmatpush1.bf16.msra.mxu0 0
    %497 = vmatprep.subr.bf16.mxu0 0
    %498 = vmatpush1.bf16.msra.mxu0 0
    %499 = vmatprep.subr.bf16.mxu0 0
    %500 = vmatpush1.bf16.msra.mxu0 0
    %501 = vmatprep.subr.bf16.mxu0 0
    %502 = vmatpush1.bf16.msra.mxu0 0
    %503 = vmatprep.subr.bf16.mxu0 0
    %504 = vmatpush1.bf16.msra.mxu0 0
    %505 = vmatprep.subr.bf16.mxu0 0
    %506 = vmatpush1.bf16.msra.mxu0 0
    %507 = vmatprep.subr.bf16.mxu0 0
    %508 = vmatpush1.bf16.msra.mxu0 0
    %509 = vmatprep.mubr.bf16.mxu0 0
    %510 = vmatmul.mubr.bf16.gmra.mrb[0].mxu0 %v475
    %v511 = vpop.f32.mrb[0].mxu0
    %v512 = vadd.f32 %v147, %v511
    %v513 = vpop.f32.mrb[0].mxu0
    %v514 = vadd.f32 %v151, %v513
    %v515 = vpop.f32.mrb[0].mxu0
    %v516 = vpop.f32.mrb[0].mxu0
    %517 = vdwg.mxu0
    %v518 = vxor.u32 %v512, 2147483648
    %v519 = vmul.f32 %v518, 1.442695
    %v520 = vpow.pop %v519
    %v521 = vadd.f32 %v520, 1.0
    %v522 = vrcp.pop %v521
    %v523 = vmul.f32 1.0, %v522
    %v524 = vtanh.pop %v514
    %v525 = vxor.u32 %v514, 2147483648
    %v526 = vmul.f32 %v525, 1.442695
    %v527 = vpow.pop %v526
    %v528 = vadd.f32 %v527, 1.0
    %v529 = vrcp.pop %v528
    %v530 = vmul.f32 1.0, %v529
    %v531 = vmul.f32 %v523, %v467
    %v532 = vmul.f32 %v523, %v524
    %534 = vrot.lane.b32.xlu0 %v532, 64
    %v535 = vpop.permute.xlu0 %534
    %v537 = vadd.f32 %v531, %v535
    %v538 = vtanh.pop %v537
    %v539 = vmul.f32 %v530, %v538
    %v540 = vpack.c.bf16 %v539, %v539
    %542 = vrot.lane.b32.xlu0 %v540, 64
    %v543 = vpop.permute.xlu0 %542
    %v545 = vsel %vm89, %v543, 0
    %547 = vmatprep.subr.bf16.mxu0 %v179
    %548 = vmatpush1.bf16.msra.mxu0 %v178
    %549 = vmatprep.subr.bf16.mxu0 %v181
    %550 = vmatpush1.bf16.msra.mxu0 %v180
    %551 = vmatprep.subr.bf16.mxu0 %v183
    %552 = vmatpush1.bf16.msra.mxu0 %v182
    %553 = vmatprep.subr.bf16.mxu0 %v185
    %554 = vmatpush1.bf16.msra.mxu0 %v184
    %555 = vmatprep.subr.bf16.mxu0 0
    %556 = vmatpush1.bf16.msra.mxu0 0
    %557 = vmatprep.subr.bf16.mxu0 0
    %558 = vmatpush1.bf16.msra.mxu0 0
    %559 = vmatprep.subr.bf16.mxu0 0
    %560 = vmatpush1.bf16.msra.mxu0 0
    %561 = vmatprep.subr.bf16.mxu0 0
    %562 = vmatpush1.bf16.msra.mxu0 0
    %563 = vmatprep.subr.bf16.mxu0 0
    %564 = vmatpush1.bf16.msra.mxu0 0
    %565 = vmatprep.subr.bf16.mxu0 0
    %566 = vmatpush1.bf16.msra.mxu0 0
    %567 = vmatprep.subr.bf16.mxu0 0
    %568 = vmatpush1.bf16.msra.mxu0 0
    %569 = vmatprep.subr.bf16.mxu0 0
    %570 = vmatpush1.bf16.msra.mxu0 0
    %571 = vmatprep.subr.bf16.mxu0 0
    %572 = vmatpush1.bf16.msra.mxu0 0
    %573 = vmatprep.subr.bf16.mxu0 0
    %574 = vmatpush1.bf16.msra.mxu0 0
    %575 = vmatprep.subr.bf16.mxu0 0
    %576 = vmatpush1.bf16.msra.mxu0 0
    %577 = vmatprep.subr.bf16.mxu0 0
    %578 = vmatpush1.bf16.msra.mxu0 0
    %579 = vmatprep.mubr.bf16.mxu0 0
    %580 = vmatmul.mubr.bf16.gmra.mrb[0].mxu0 %v545
    %v581 = vpop.f32.mrb[0].mxu0
    %v582 = vadd.f32 %v147, %v581
    %v583 = vpop.f32.mrb[0].mxu0
    %v584 = vadd.f32 %v151, %v583
    %v585 = vpop.f32.mrb[0].mxu0
    %v586 = vpop.f32.mrb[0].mxu0
    %587 = vdwg.mxu0
    %v588 = vxor.u32 %v582, 2147483648
    %v589 = vmul.f32 %v588, 1.442695
    %v590 = vpow.pop %v589
    %v591 = vadd.f32 %v590, 1.0
    %v592 = vrcp.pop %v591
    %v593 = vmul.f32 1.0, %v592
    %v594 = vtanh.pop %v584
    %v595 = vxor.u32 %v584, 2147483648
    %v596 = vmul.f32 %v595, 1.442695
    %v597 = vpow.pop %v596
    %v598 = vadd.f32 %v597, 1.0
    %v599 = vrcp.pop %v598
    %v600 = vmul.f32 1.0, %v599
    %v601 = vmul.f32 %v593, %v537
    %v602 = vmul.f32 %v593, %v594
    %604 = vrot.lane.b32.xlu0 %v602, 64
    %v605 = vpop.permute.xlu0 %604
    %v607 = vadd.f32 %v601, %v605
    %v608 = vtanh.pop %v607
    %v609 = vmul.f32 %v600, %v608
    %v610 = vpack.c.bf16 %v609, %v609
    %612 = vrot.lane.b32.xlu0 %v610, 64
    %v613 = vpop.permute.xlu0 %612
    %v615 = vsel %vm89, %v613, 0
    %617 = vmatprep.subr.bf16.mxu0 %v179
    %618 = vmatpush1.bf16.msra.mxu0 %v178
    %619 = vmatprep.subr.bf16.mxu0 %v181
    %620 = vmatpush1.bf16.msra.mxu0 %v180
    %621 = vmatprep.subr.bf16.mxu0 %v183
    %622 = vmatpush1.bf16.msra.mxu0 %v182
    %623 = vmatprep.subr.bf16.mxu0 %v185
    %624 = vmatpush1.bf16.msra.mxu0 %v184
    %625 = vmatprep.subr.bf16.mxu0 0
    %626 = vmatpush1.bf16.msra.mxu0 0
    %627 = vmatprep.subr.bf16.mxu0 0
    %628 = vmatpush1.bf16.msra.mxu0 0
    %629 = vmatprep.subr.bf16.mxu0 0
    %630 = vmatpush1.bf16.msra.mxu0 0
    %631 = vmatprep.subr.bf16.mxu0 0
    %632 = vmatpush1.bf16.msra.mxu0 0
    %633 = vmatprep.subr.bf16.mxu0 0
    %634 = vmatpush1.bf16.msra.mxu0 0
    %635 = vmatprep.subr.bf16.mxu0 0
    %636 = vmatpush1.bf16.msra.mxu0 0
    %637 = vmatprep.subr.bf16.mxu0 0
    %638 = vmatpush1.bf16.msra.mxu0 0
    %639 = vmatprep.subr.bf16.mxu0 0
    %640 = vmatpush1.bf16.msra.mxu0 0
    %641 = vmatprep.subr.bf16.mxu0 0
    %642 = vmatpush1.bf16.msra.mxu0 0
    %643 = vmatprep.subr.bf16.mxu0 0
    %644 = vmatpush1.bf16.msra.mxu0 0
    %645 = vmatprep.subr.bf16.mxu0 0
    %646 = vmatpush1.bf16.msra.mxu0 0
    %647 = vmatprep.subr.bf16.mxu0 0
    %648 = vmatpush1.bf16.msra.mxu0 0
    %649 = vmatprep.mubr.bf16.mxu0 0
    %650 = vmatmul.mubr.bf16.gmra.mrb[0].mxu0 %v615
    %v651 = vpop.f32.mrb[0].mxu0
    %v652 = vadd.f32 %v147, %v651
    %v653 = vpop.f32.mrb[0].mxu0
    %v654 = vadd.f32 %v151, %v653
    %v655 = vpop.f32.mrb[0].mxu0
    %v656 = vpop.f32.mrb[0].mxu0
    %657 = vdwg.mxu0
    %v658 = vxor.u32 %v652, 2147483648
    %v659 = vmul.f32 %v658, 1.442695
    %v660 = vpow.pop %v659
    %v661 = vadd.f32 %v660, 1.0
    %v662 = vrcp.pop %v661
    %v663 = vmul.f32 1.0, %v662
    %v664 = vtanh.pop %v654
    %v665 = vxor.u32 %v654, 2147483648
    %v666 = vmul.f32 %v665, 1.442695
    %v667 = vpow.pop %v666
    %v668 = vadd.f32 %v667, 1.0
    %v669 = vrcp.pop %v668
    %v670 = vmul.f32 1.0, %v669
    %v671 = vmul.f32 %v663, %v607
    %v672 = vmul.f32 %v663, %v664
    %674 = vrot.lane.b32.xlu0 %v672, 64
    %v675 = vpop.permute.xlu0 %674
    %v677 = vadd.f32 %v671, %v675
    %v678 = vtanh.pop %v677
    %v679 = vmul.f32 %v670, %v678
    %v680 = vpack.c.bf16 %v679, %v679
    %682 = vrot.lane.b32.xlu0 %v680, 64
    %v683 = vpop.permute.xlu0 %682
    %v685 = vsel %vm89, %v683, 0
    %687 = vmatprep.subr.bf16.mxu0 %v179
    %688 = vmatpush1.bf16.msra.mxu0 %v178
    %689 = vmatprep.subr.bf16.mxu0 %v181
    %690 = vmatpush1.bf16.msra.mxu0 %v180
    %691 = vmatprep.subr.bf16.mxu0 %v183
    %692 = vmatpush1.bf16.msra.mxu0 %v182
    %693 = vmatprep.subr.bf16.mxu0 %v185
    %694 = vmatpush1.bf16.msra.mxu0 %v184
    %695 = vmatprep.subr.bf16.mxu0 0
    %696 = vmatpush1.bf16.msra.mxu0 0
    %697 = vmatprep.subr.bf16.mxu0 0
    %698 = vmatpush1.bf16.msra.mxu0 0
    %699 = vmatprep.subr.bf16.mxu0 0
    %700 = vmatpush1.bf16.msra.mxu0 0
    %701 = vmatprep.subr.bf16.mxu0 0
    %702 = vmatpush1.bf16.msra.mxu0 0
    %703 = vmatprep.subr.bf16.mxu0 0
    %704 = vmatpush1.bf16.msra.mxu0 0
    %705 = vmatprep.subr.bf16.mxu0 0
    %706 = vmatpush1.bf16.msra.mxu0 0
    %707 = vmatprep.subr.bf16.mxu0 0
    %708 = vmatpush1.bf16.msra.mxu0 0
    %709 = vmatprep.subr.bf16.mxu0 0
    %710 = vmatpush1.bf16.msra.mxu0 0
    %711 = vmatprep.subr.bf16.mxu0 0
    %712 = vmatpush1.bf16.msra.mxu0 0
    %713 = vmatprep.subr.bf16.mxu0 0
    %714 = vmatpush1.bf16.msra.mxu0 0
    %715 = vmatprep.subr.bf16.mxu0 0
    %716 = vmatpush1.bf16.msra.mxu0 0
    %717 = vmatprep.subr.bf16.mxu0 0
    %718 = vmatpush1.bf16.msra.mxu0 0
    %719 = vmatprep.mubr.bf16.mxu0 0
    %720 = vmatmul.mubr.bf16.gmra.mrb[0].mxu0 %v685
    %v721 = vpop.f32.mrb[0].mxu0
    %v722 = vadd.f32 %v147, %v721
    %v723 = vpop.f32.mrb[0].mxu0
    %v724 = vadd.f32 %v151, %v723
    %v725 = vpop.f32.mrb[0].mxu0
    %v726 = vpop.f32.mrb[0].mxu0
    %727 = vdwg.mxu0
    %v728 = vxor.u32 %v722, 2147483648
    %v729 = vmul.f32 %v728, 1.442695
    %v730 = vpow.pop %v729
    %v731 = vadd.f32 %v730, 1.0
    %v732 = vrcp.pop %v731
    %v733 = vmul.f32 1.0, %v732
    %v734 = vtanh.pop %v724
    %v735 = vxor.u32 %v724, 2147483648
    %v736 = vmul.f32 %v735, 1.442695
    %v737 = vpow.pop %v736
    %v738 = vadd.f32 %v737, 1.0
    %v739 = vrcp.pop %v738
    %v740 = vmul.f32 1.0, %v739
    %v741 = vmul.f32 %v733, %v677
    %v742 = vmul.f32 %v733, %v734
    %744 = vrot.lane.b32.xlu0 %v742, 64
    %v745 = vpop.permute.xlu0 %744
    %v747 = vadd.f32 %v741, %v745
    %v748 = vtanh.pop %v747
    %v749 = vmul.f32 %v740, %v748
    %v750 = vlaneseq
    %v751 = vand.u32 %v750, 127
    %vm752 = vcmp.lt.s32.totalorder %v751, 32
    %754 = vrot.lane.b32.xlu0 %v259, 64
    %v755 = vpop.permute.xlu0 %754
    %758 = vrot.lane.b32.xlu0 %v749, 64
    %v759 = vpop.permute.xlu0 %758
    %v761 = vsel %vm752, %v755, %v759
    %763 = vrot.lane.b32.xlu0 %v329, 64
    %v764 = vpop.permute.xlu0 %763
    %767 = vrot.lane.b32.xlu0 %v679, 64
    %v768 = vpop.permute.xlu0 %767
    %v770 = vsel %vm752, %v764, %v768
    %772 = vrot.lane.b32.xlu0 %v399, 64
    %v773 = vpop.permute.xlu0 %772
    %776 = vrot.lane.b32.xlu0 %v609, 64
    %v777 = vpop.permute.xlu0 %776
    %v779 = vsel %vm752, %v773, %v777
    %781 = vrot.lane.b32.xlu0 %v469, 64
    %v782 = vpop.permute.xlu0 %781
    %785 = vrot.lane.b32.xlu0 %v539, 64
    %v786 = vpop.permute.xlu0 %785
    %v788 = vsel %vm752, %v782, %v786
    %v789 = vsel %vm752, %v786, %v782
    %v790 = vsel %vm752, %v777, %v773
    %v791 = vsel %vm752, %v768, %v764
    %v792 = vsel %vm752, %v759, %v755
    %794 = vrot.lane.b32.xlu0 %v770, 64
    %v795 = vpop.permute.xlu0 %794
    %798 = vrot.lane.b32.xlu0 %v788, 64
    %v799 = vpop.permute.xlu0 %798
    %802 = vrot.lane.b32.xlu0 %v790, 64
    %v803 = vpop.permute.xlu0 %802
    %806 = vrot.lane.b32.xlu0 %v792, 64
    %v807 = vpop.permute.xlu0 %806
    %v809 = vsel %vm89, %v761, %v795
    %v810 = vsel %vm89, %v779, %v799
    %v811 = vsel %vm89, %v789, %v803
    %v812 = vsel %vm89, %v791, %v807
    %v817 = vcombine.low %v809, %v810
    %v818 = vcombine.low %v811, %v812
    %v820 = vunpack.c.l.s4 1983009808
    %v821 = vunpack.c.0.s8 %v820
    %v822 = vlaneseq
    %v823 = vshrl.u32 %v822, 7
    %v824 = vsub.s32 %v821, %v823
    %v825 = vrot.slane %v817, %v824
    %v827 = vunpack.c.l.s4 1983009808
    %v828 = vunpack.c.0.s8 %v827
    %v829 = vlaneseq
    %v830 = vshrl.u32 %v829, 7
    %v831 = vsub.s32 %v828, %v830
    %v832 = vrot.slane %v818, %v831
    %v833 = vcombine.low %v825, %v832
    %835 = vst [vmem:[%s5] sm:$0xff] %v833
    // Predicated region
    $region30: #{decoder_binary_rnn_forward.1} parent=1 // pred_check
      _
    $region31: #{decoder_binary_rnn_forward.1} parent=1 // pred_check_branch
      %837 = sbr.rel (0) target = $region33
    $region32: #{decoder_binary_rnn_forward.1} parent=1 // pred_region
      _
    $region33: #{decoder_binary_rnn_forward.1} parent=1 // pred_fallthru
      _
    // Predicated region
    $region34: #{decoder_binary_rnn_forward.1} parent=1 // pred_check
      _
    $region35: #{decoder_binary_rnn_forward.1} parent=1 // pred_check_branch
      %839 = sbr.rel (0) target = $region37
    $region36: #{decoder_binary_rnn_forward.1} parent=1 // pred_region
      _
    $region37: #{decoder_binary_rnn_forward.1} parent=1 // pred_fallthru
      _
    %840 = vsyncpa [#allocation3], 1
    %841 = vsyncpa [#allocation5], 1

</llo_original>
